<compile_context>
chip_gen: v7x
topology: tpu7x:2x2x1
jax: 0.10.0
libtpu: 0.0.40
codegen_flags: <defaults>
</compile_context>

<pallas_src>
import functools

import jax
import jax.numpy as jnp
from jax.experimental import pallas as pl
from jax.experimental.pallas import tpu as pltpu

NUM_PID = 200       # small synthetic "person-ID" count (deliberately NOT lane aligned)
FEAT_DIM = 32       # lut feature dim
N = 20              # batch size (deliberately NOT a multiple of the batch tile)
TN = 8              # batch tile for the demo (multiple of 8); production: 256-1024
THRESHOLD = 0.75


def nrce_kernel(logits_ref, sides_ref, nll_ref, *, n_rows):
    """Fused column suppression + log-softmax + masked per-row NLL for one batch tile."""
    logits = logits_ref[...].astype(jnp.float32)   # (TN, C); f32 math (v5e has no bf16 VPU)
    sides = sides_ref[...]                         # (TN, 2) int32 packed side inputs
    label = sides[:, 0:1]                          # (TN, 1); -1 => ignored row
    col = sides[:, 1:2]                            # (TN, 1); -1 => no suppression

    tn, c = logits.shape
    cidx = jax.lax.broadcasted_iota(jnp.int32, (tn, c), 1)   # class index per lane

    # noise_supressor: logits[i, col[i]] = -100 (col == -1 never matches any lane)
    logits = jnp.where(cidx == col, jnp.float32(-100.0), logits)

    # numerically stable log-sum-exp over classes (EUP exp + XLU lane reduce)
    row_max = jnp.max(logits, axis=1, keepdims=True)
    lse = jnp.log(jnp.sum(jnp.exp(logits - row_max), axis=1, keepdims=True)) + row_max

    # target logit via mask-gather; label == -1 never matches any lane
    tgt = jnp.sum(jnp.where(cidx == label, logits, 0.0), axis=1, keepdims=True)

    # valid = real (in-range) batch row AND labeled (label >= 0).  The row mask
    # neutralizes garbage rows of a ragged edge tile; where-select (not multiply)
    # guarantees NaN/Inf from garbage can never leak into the sum.
    ridx = jax.lax.broadcasted_iota(jnp.int32, (tn, 1), 0)
    in_batch = (pl.program_id(0) * tn + ridx) < n_rows
    valid = (label >= 0) & in_batch
    nll = jnp.where(valid, lse - tgt, jnp.float32(0.0))      # (TN, 1)

    # Lane-dense store: transpose the per-row column to a (1, TN) row (cheap XLU
    # transpose) so the output store is not a lane-width-1 masked partial store.
    nll_ref[...] = jnp.transpose(nll)[None, :, :]            # (1, 1, TN)


def _nrce_forward(logits, label, max_val, max_ind, *, num_pid, threshold, tn):
    """Whole forward under one jax.jit: side-input packing + gridded kernel + mean."""
    n, c = logits.shape
    label = label.astype(jnp.int32)

    # Tiny side-input packing (fuses under jit, negligible vs the logits stream).
    valid = label < num_pid                              # ignore_index == num_pid
    clamped = jnp.minimum(label, num_pid - 1)
    ignore = (max_val[clamped] > threshold) & valid
    col_eff = jnp.where(ignore, max_ind[clamped], -1).astype(jnp.int32)
    lab_eff = jnp.where(valid, label, -1).astype(jnp.int32)
    sides = jnp.stack([lab_eff, col_eff], axis=1)        # (N, 2) int32

    # Static tile-size bookkeeping (n, c, tn are Python ints at trace time).
    tn = max(8, min(tn, -(-n // 8) * 8))                 # don't over-tile tiny batches
    num_tiles = pl.cdiv(n, tn)

    # Double-buffered logits tile + headroom; floor at the conservative 16 MiB default.
    logits_tile_bytes = tn * c * logits.dtype.itemsize
    vmem_limit = int(min(max(2 * logits_tile_bytes + (2 << 20), 16 << 20), 100 << 20))

    kernel = functools.partial(nrce_kernel, n_rows=n)
    per_row = pl.pallas_call(
        kernel,
        out_shape=jax.ShapeDtypeStruct((num_tiles, 1, tn), jnp.float32),
        grid_spec=pltpu.PrefetchScalarGridSpec(
            num_scalar_prefetch=0,
            grid=(num_tiles,),
            in_specs=[
                pl.BlockSpec((tn, c), lambda i: (i, 0)),   # full class row per tile
                pl.BlockSpec((tn, 2), lambda i: (i, 0)),   # packed side inputs
            ],
            out_specs=pl.BlockSpec((1, 1, tn), lambda i: (i, 0, 0)),
        ),
        compiler_params=pltpu.CompilerParams(
            dimension_semantics=("parallel",),             # shards batch across v7x's 2 TCs
            vmem_limit_bytes=vmem_limit,
        ),
    )(logits, sides)

    # reduction='mean' with ignore_index: exact divide by valid count (padded/ignored
    # rows contributed exactly 0).  NaN for an all-ignored batch (0/0), matching torch.
    return jnp.sum(per_row) / jnp.sum(valid.astype(jnp.float32))


class NRCEPallas:
    """NRCE (noise-robust CE from OIM) with a Pallas TPU forward kernel."""

    def __init__(self, lut, num_pid=NUM_PID, threshold=THRESHOLD, tn=256):
        assert tn % 8 == 0, "batch tile must be a multiple of 8 sublanes"
        self.num_pid = num_pid
        self.threshold = threshold
        sim_mat = lut @ lut.T                                # [P, P] (init-time glue)
        diag = jnp.arange(num_pid)
        sim_mat = sim_mat.at[diag, diag].set(0.0)
        self.max_val = jnp.max(sim_mat, axis=1)              # [P]
        self.max_ind = jnp.argmax(sim_mat, axis=1).astype(jnp.int32)  # [P]
        self._forward = jax.jit(functools.partial(
            _nrce_forward, num_pid=num_pid, threshold=threshold, tn=tn))

    def __call__(self, logits, label):
        return self._forward(logits, label, self.max_val, self.max_ind)


def nrce_reference(logits, label, max_val, max_ind, num_pid, threshold):
    """Pure-JAX reference matching the PyTorch forward semantics."""
    clamped = jnp.minimum(label, num_pid - 1)
    val = max_val[clamped]
    ind = max_ind[clamped]
    ignore = (val > threshold) & (label < num_pid)
    cidx = jnp.arange(logits.shape[1])[None, :]
    logits = jnp.where((cidx == ind[:, None]) & ignore[:, None], -100.0, logits)
    logp = jax.nn.log_softmax(logits, axis=1)
    valid = label < num_pid
    safe_label = jnp.minimum(label, logits.shape[1] - 1)
    nll = -jnp.take_along_axis(logp, safe_label[:, None], axis=1)[:, 0]
    return jnp.sum(jnp.where(valid, nll, 0.0)) / jnp.sum(valid)


if __name__ == "__main__":
    key = jax.random.PRNGKey(0)
    k_lut, k_noise, k_logits, k_label = jax.random.split(key, 4)

    # Deterministic "lookup table" (unit-norm rows like OIM features).
    lut = jax.random.normal(k_lut, (NUM_PID, FEAT_DIM), dtype=jnp.float32)
    lut = lut / jnp.linalg.norm(lut, axis=1, keepdims=True)
    # Make identity 1 a near-duplicate of identity 0 so the noise-suppression
    # branch (similarity > threshold) is actually exercised.
    near_dup = lut[0] + 0.05 * jax.random.normal(k_noise, (FEAT_DIM,), dtype=jnp.float32)
    lut = lut.at[1].set(near_dup / jnp.linalg.norm(near_dup))

    logits = jax.random.normal(k_logits, (N, NUM_PID), dtype=jnp.float32)
    label = jax.random.randint(k_label, (N,), 0, NUM_PID, dtype=jnp.int32)
    label = label.at[0].set(0)          # triggers suppression of column max_ind[0]
    label = label.at[1].set(1)          # triggers suppression of column max_ind[1]
    label = label.at[5].set(NUM_PID)    # unlabeled sample -> ignore_index

    # Demo tile TN=8 with N=20 exercises a multi-tile grid AND a ragged edge tile.
    model = NRCEPallas(lut, num_pid=NUM_PID, threshold=THRESHOLD, tn=TN)
    loss = jax.block_until_ready(model(logits, label))

    ref = nrce_reference(logits, label, model.max_val, model.max_ind,
                         NUM_PID, THRESHOLD)
    assert jnp.allclose(loss, ref, rtol=1e-5, atol=1e-5), (loss, ref)

    print("KERNEL_OK")
</pallas_src>

<mosaic_0001>
module attributes {stable_mosaic.version = 11 : i64} {
  func.func @nrce_kernel(%arg0: i32, %arg1: memref<8x200xf32, #tpu.memory_space<vmem>>, %arg2: memref<8x2xi32, #tpu.memory_space<vmem>>, %arg3: memref<1x1x8xf32, #tpu.memory_space<vmem>>) attributes {dimension_semantics = [#tpu.dimension_semantics<parallel>], iteration_bounds = array<i64: 3>, scalar_prefetch = 0 : i64, scratch_operands = 0 : i64, tpu.core_type = #tpu.core_type<tc>, window_params = [{transform_indices = @transform_0, window_bounds = array<i64: 8, 200>}, {transform_indices = @transform_1, window_bounds = array<i64: 8, 2>}, {transform_indices = @transform_2, window_bounds = array<i64: 1, 1, 8>}]} {
    %c0 = arith.constant 0 : index
    %c0_0 = arith.constant 0 : index
    %0 = vector.load %arg1[%c0, %c0_0] : memref<8x200xf32, #tpu.memory_space<vmem>>, vector<8x200xf32>
    %c0_1 = arith.constant 0 : index
    %c0_2 = arith.constant 0 : index
    %1 = vector.load %arg2[%c0_1, %c0_2] : memref<8x2xi32, #tpu.memory_space<vmem>>, vector<8x2xi32>
    %2 = vector.extract_strided_slice %1 {offsets = [0, 0], sizes = [8, 1], strides = [1, 1]} : vector<8x2xi32> to vector<8x1xi32>
    %3 = vector.extract_strided_slice %1 {offsets = [0, 1], sizes = [8, 1], strides = [1, 1]} : vector<8x2xi32> to vector<8x1xi32>
    %4 = tpu.iota {dimensions = array<i32: 1>} : vector<8x200xi32>
    %5 = vector.broadcast %3 : vector<8x1xi32> to vector<8x200xi32>
    %6 = arith.cmpi eq, %4, %5 : vector<8x200xi32>
    %cst = arith.constant -1.000000e+02 : f32
    %7 = vector.broadcast %cst : f32 to vector<8x200xf32>
    %8 = arith.select %6, %7, %0 : vector<8x200xi1>, vector<8x200xf32>
    %cst_3 = arith.constant dense<0xFF800000> : vector<8xf32>
    %9 = vector.multi_reduction <maximumf>, %8, %cst_3 [1] : vector<8x200xf32> to vector<8xf32>
    %10 = vector.shape_cast %9 : vector<8xf32> to vector<8x1xf32>
    %11 = vector.broadcast %10 : vector<8x1xf32> to vector<8x200xf32>
    %12 = arith.subf %8, %11 : vector<8x200xf32>
    %13 = math.exp %12 : vector<8x200xf32>
    %cst_4 = arith.constant dense<0.000000e+00> : vector<8xf32>
    %14 = vector.multi_reduction <add>, %13, %cst_4 [1] : vector<8x200xf32> to vector<8xf32>
    %15 = vector.shape_cast %14 : vector<8xf32> to vector<8x1xf32>
    %16 = math.log %15 : vector<8x1xf32>
    %17 = arith.addf %16, %10 : vector<8x1xf32>
    %18 = vector.broadcast %2 : vector<8x1xi32> to vector<8x200xi32>
    %19 = arith.cmpi eq, %4, %18 : vector<8x200xi32>
    %cst_5 = arith.constant 0.000000e+00 : f32
    %20 = vector.broadcast %cst_5 : f32 to vector<8x200xf32>
    %21 = arith.select %19, %8, %20 : vector<8x200xi1>, vector<8x200xf32>
    %cst_6 = arith.constant dense<0.000000e+00> : vector<8xf32>
    %22 = vector.multi_reduction <add>, %21, %cst_6 [1] : vector<8x200xf32> to vector<8xf32>
    %23 = vector.shape_cast %22 : vector<8xf32> to vector<8x1xf32>
    %24 = tpu.iota {dimensions = array<i32: 0>} : vector<8x1xi32>
    %c8_i32 = arith.constant 8 : i32
    %25 = arith.muli %arg0, %c8_i32 : i32
    %26 = vector.broadcast %25 : i32 to vector<8x1xi32>
    %27 = arith.addi %26, %24 : vector<8x1xi32>
    %c20_i32 = arith.constant 20 : i32
    %28 = vector.broadcast %c20_i32 : i32 to vector<8x1xi32>
    %29 = arith.cmpi slt, %27, %28 : vector<8x1xi32>
    %c0_i32 = arith.constant 0 : i32
    %30 = vector.broadcast %c0_i32 : i32 to vector<8x1xi32>
    %31 = arith.cmpi sge, %2, %30 : vector<8x1xi32>
    %32 = arith.andi %31, %29 : vector<8x1xi1>
    %33 = arith.subf %17, %23 : vector<8x1xf32>
    %cst_7 = arith.constant 0.000000e+00 : f32
    %34 = vector.broadcast %cst_7 : f32 to vector<8x1xf32>
    %35 = arith.select %32, %33, %34 : vector<8x1xi1>, vector<8x1xf32>
    %36 = tpu.transpose %35, [1, 0] : vector<8x1xf32> -> vector<1x8xf32>
    %37 = vector.shape_cast %36 : vector<1x8xf32> to vector<1x1x8xf32>
    %c0_8 = arith.constant 0 : index
    %c0_9 = arith.constant 0 : index
    %c0_10 = arith.constant 0 : index
    %38 = vector.load %arg3[%c0_8, %c0_9, %c0_10] : memref<1x1x8xf32, #tpu.memory_space<vmem>>, vector<1x1x8xf32>
    tpu.vector_store %arg3[%c0_8, %c0_9, %c0_10], %37 {strides = array<i32>} : memref<1x1x8xf32, #tpu.memory_space<vmem>>, vector<1x1x8xf32>,
    return
  }
  func.func @transform_0(%arg0: i32) -> (i32, i32) {
    %c0_i32 = arith.constant 0 : i32
    %c0_i32_0 = arith.constant 0 : i32
    return %arg0, %c0_i32 : i32, i32
  }
  func.func @transform_1(%arg0: i32) -> (i32, i32) {
    %c0_i32 = arith.constant 0 : i32
    %c0_i32_0 = arith.constant 0 : i32
    return %arg0, %c0_i32 : i32, i32
  }
  func.func @transform_2(%arg0: i32) -> (i32, i32, i32) {
    %c0_i32 = arith.constant 0 : i32
    %c0_i32_0 = arith.constant 0 : i32
    %c0_i32_1 = arith.constant 0 : i32
    return %arg0, %c0_i32, %c0_i32_0 : i32, i32, i32
  }
}

</mosaic_0001>

<llo_original>
// kernel: _nrce_forward.1
$region0: #{_nrce_forward.1}
  #allocation0 [shape = 'u32[]', space=smem, size = 0x4, offset = 0x4, fixed_abs, tag = 'smem constant byte address 0x4 - core index']
  #allocation1 [shape = 'u32[144,128]{1,0:T(1,128)}', space=vmem, size = 0x12000, scoped, tag = 'internal scratch']
  %s0 = inlined_call_operand.vmem [shape: f32[20,200], index: 0, kind: input, shape index: {}]
  %s1 = inlined_call_operand.vmem [shape: s32[20,2], index: 1, kind: input, shape index: {}]
  %s2 = inlined_call_operand.vmem [shape: f32[3,1,8], index: 2, kind: output, shape index: {}]
  %s3 = sld [smem:[#allocation0]]
  $region41: #{_nrce_forward.1} parent=0
    _
  %s5 = ssub.s32 1, %s3
  %s6 = scalar_select 0, %s5, %s3
  loop: start=0, step=1, limit=5
  $region2: #{_nrce_forward.1} parent=0 // loop_pre_header
    _
  $region3: #{_nrce_forward.1} parent=0 // loop_header
    %s8 = sphi 0, %s12
    %p9 = scmp.ge.s32.totalorder %s8, 5
    %s18 = sphi 0, %s20
    %s21 = sphi 0, %s18
    %s22 = sphi 0, %s21
    %s38 = sphi 0, %s22
    %s44 = sphi 0, %s46
    %s47 = sphi 0, %s44
    %s48 = sphi 0, %s47
    %s64 = sphi 0, %s48
    %s70 = sphi 0, %s72
    %s73 = sphi 0, %s70
    %s74 = sphi 0, %s73
    %s90 = sphi 0, %s74
  $region4: #{_nrce_forward.1} parent=0 // loop_header_branch
    %11 = sbr.rel (%p9) target = $region8
  $region5: #{_nrce_forward.1} parent=0 // loop_body
    %s13 = ssub.s32 %s8, 1
    %s14 = ssub.s32 %s8, 2
    %s15 = sadd.s32 %s8, 1
    %s16 = ssub.s32 %s8, %s15
    %p17 = scmp.eq.s32.totalorder %s16, 0
    %s19 = sadd.s32 %s18, 1
    %s20 = scalar_select %p17, %s18, %s19
    %p23 = pneg %p17
    %p24 = scmp.eq.s32.totalorder %s8, 2
    %p25 = por %p23, %p24
    %p26 = scmp.ne.s32.totalorder %s18, %s21
    %p27 = scmp.eq.s32.totalorder %s8, 0
    %p28 = por %p26, %p27
    %p29 = scmp.ne.s32.totalorder %s18, %s21
    %p30 = scmp.eq.s32.totalorder %s13, 2
    %p31 = por %p29, %p30
    %p32 = scmp.ne.s32.totalorder %s21, %s22
    %p33 = scmp.eq.s32.totalorder %s13, 0
    %p34 = por %p32, %p33
    %p35 = scmp.ne.s32.totalorder %s21, %s22
    %p36 = scmp.eq.s32.totalorder %s14, 2
    %p37 = por %p35, %p36
    %p39 = scmp.ne.s32.totalorder %s22, %s38
    %p40 = scmp.eq.s32.totalorder %s14, 0
    %p41 = por %p39, %p40
    %s42 = ssub.s32 %s8, %s15
    %p43 = scmp.eq.s32.totalorder %s42, 0
    %s45 = sadd.s32 %s44, 1
    %s46 = scalar_select %p43, %s44, %s45
    %p49 = pneg %p43
    %p50 = scmp.eq.s32.totalorder %s8, 2
    %p51 = por %p49, %p50
    %p52 = scmp.ne.s32.totalorder %s44, %s47
    %p53 = scmp.eq.s32.totalorder %s8, 0
    %p54 = por %p52, %p53
    %p55 = scmp.ne.s32.totalorder %s44, %s47
    %p56 = scmp.eq.s32.totalorder %s13, 2
    %p57 = por %p55, %p56
    %p58 = scmp.ne.s32.totalorder %s47, %s48
    %p59 = scmp.eq.s32.totalorder %s13, 0
    %p60 = por %p58, %p59
    %p61 = scmp.ne.s32.totalorder %s47, %s48
    %p62 = scmp.eq.s32.totalorder %s14, 2
    %p63 = por %p61, %p62
    %p65 = scmp.ne.s32.totalorder %s48, %s64
    %p66 = scmp.eq.s32.totalorder %s14, 0
    %p67 = por %p65, %p66
    %s68 = ssub.s32 %s8, %s15
    %p69 = scmp.eq.s32.totalorder %s68, 0
    %s71 = sadd.s32 %s70, 1
    %s72 = scalar_select %p69, %s70, %s71
    %p75 = pneg %p69
    %p76 = scmp.eq.s32.totalorder %s8, 2
    %p77 = por %p75, %p76
    %p78 = scmp.ne.s32.totalorder %s70, %s73
    %p79 = scmp.eq.s32.totalorder %s8, 0
    %p80 = por %p78, %p79
    %p81 = scmp.ne.s32.totalorder %s70, %s73
    %p82 = scmp.eq.s32.totalorder %s13, 2
    %p83 = por %p81, %p82
    %p84 = scmp.ne.s32.totalorder %s73, %s74
    %p85 = scmp.eq.s32.totalorder %s13, 0
    %p86 = por %p84, %p85
    %p87 = scmp.ne.s32.totalorder %s73, %s74
    %p88 = scmp.eq.s32.totalorder %s14, 2
    %p89 = por %p87, %p88
    %p91 = scmp.ne.s32.totalorder %s74, %s90
    %p92 = scmp.eq.s32.totalorder %s14, 0
    %p93 = por %p91, %p92
    %p94 = scmp.le.s32.totalorder 1, %s8
    %p95 = scmp.lt.s32.totalorder %s8, 4
    %p96 = pnand %p94, %p95
    %p97 = pneg %p96
    // Predicated region
    $region9: #{_nrce_forward.1} parent=5 // pred_check
      _
    $region10: #{_nrce_forward.1} parent=5 // pred_check_branch
      %99 = sbr.rel (%p96) target = $region12
    $region11: #{_nrce_forward.1} parent=5 // pred_region
      %s100 = ssub.s32 %s8, 1
    $region12: #{_nrce_forward.1} parent=5 // pred_fallthru
      _
    %p101 = scmp.lt.s32.totalorder %s8, 3
    // Predicated region
    $region13: #{_nrce_forward.1} parent=5 // pred_check
      %p102 = pneg %p101
    $region14: #{_nrce_forward.1} parent=5 // pred_check_branch
      %104 = sbr.rel (%p102) target = $region16
    $region15: #{_nrce_forward.1} parent=5 // pred_region
      // Predicated region
      $region17: #{_nrce_forward.1} parent=15 // pred_check
        %p105 = pneg %p28
      $region18: #{_nrce_forward.1} parent=15 // pred_check_branch
        %107 = sbr.rel (%p105) target = $region20
      $region19: #{_nrce_forward.1} parent=15 // pred_region
        %p108 = scmp.lt.s32.totalorder %s8, 2
        %s109 = scalar_select %p108, %s8, 2
        %s110 = smul.addr %s109, 2
        %s111 = smul.addr %s110, 8
        %s112 = scalar_lea.vmem %s0, %s111
      $region20: #{_nrce_forward.1} parent=15 // pred_fallthru
        _
      // Predicated region
      $region21: #{_nrce_forward.1} parent=15 // pred_check
        %p113 = pneg %p54
      $region22: #{_nrce_forward.1} parent=15 // pred_check_branch
        %115 = sbr.rel (%p113) target = $region24
      $region23: #{_nrce_forward.1} parent=15 // pred_region
        %p116 = scmp.lt.s32.totalorder %s8, 2
        %s117 = scalar_select %p116, %s8, 2
        %s118 = smul.addr %s117, 8
        %s119 = scalar_lea.vmem %s1, %s118
      $region24: #{_nrce_forward.1} parent=15 // pred_fallthru
        _
    $region16: #{_nrce_forward.1} parent=5 // pred_fallthru
      _
    %p120 = scmp.le.s32.totalorder 1, %s8
    %p121 = scmp.lt.s32.totalorder %s8, 4
    %p122 = pnand %p120, %p121
    %p123 = pneg %p122
    // Predicated region
    $region25: #{_nrce_forward.1} parent=5 // pred_check
      _
    $region26: #{_nrce_forward.1} parent=5 // pred_check_branch
      %125 = sbr.rel (%p122) target = $region28
    $region27: #{_nrce_forward.1} parent=5 // pred_region
      %s126 = ssub.s32 %s8, 1
      %p127 = scmp.lt.s32.totalorder %s13, 2
      %s128 = scalar_select %p127, %s13, 2
      %s129 = smul.addr %s128, 2
      %s130 = smul.addr %s129, 8
      %s131 = scalar_lea.vmem %s0, %s130
      %p132 = pneg %p34
      %p133 = pneg %p31
      %p134 = scmp.lt.s32.totalorder %s13, 2
      %s135 = scalar_select %p134, %s13, 2
      %s136 = smul.addr %s135, 8
      %s137 = scalar_lea.vmem %s1, %s136
      %p138 = pneg %p60
      %p139 = pneg %p57
      %p140 = pneg %p86
      %p141 = pneg %p83
      %p142 = scmp.lt.s32.totalorder %s13, 2
      %s143 = scalar_select %p142, %s13, 2
      %s144 = scalar_lea.vmem %s2, %s143
      %p145 = scmp.lt.s32.totalorder %s13, 2
      %s146 = scalar_select %p145, %s13, 2
      %s147 = smul.addr %s146, 2
      %s148 = smul.addr %s147, 8
      %s149 = scalar_lea.vmem %s0, %s148
      %p150 = scmp.lt.s32.totalorder %s13, 2
      %s151 = scalar_select %p150, %s13, 2
      %s152 = smul.addr %s151, 8
      %s153 = scalar_lea.vmem %s1, %s152
      %p154 = scmp.lt.s32.totalorder %s13, 2
      %s155 = scalar_select %p154, %s13, 2
      %s156 = scalar_lea.vmem %s2, %s155
      %v157 = vld [vmem:[%s149] sm:$0xff]
      %v158 = vld [vmem:[%s149 + $0x8] sm:$0xff]
      %v159 = vld [vmem:[%s153] sm:$0xff]
      %v160 = vlaneseq
      %v161 = vand.u32 %v160, 127
      %v162 = vadd.s32 %v161, 128
      %163 = vset.pattern.permute.xlu0 1
      %164 = vperm.xlu0 %163, %v159
      %v165 = vpop.permute.xlu0 %164
      %vm166 = vcmp.eq.s32.totalorder %v161, %v165
      %vm167 = vcmp.eq.s32.totalorder %v162, %v165
      %v168 = vsel %vm166, -100.0, %v157
      %v169 = vsel %vm167, -100.0, %v158
      %vm170 = vcmask 588800
      %v171 = vsel %vm170, %v169, -inf
      %v172 = vmax.f32 %v168, %v171
      %173 = vmax.xlane.f32.xlu0 %v172
      %v174 = vpop.xlane.xlu0 %173
      %v175 = vsub.f32 %v168, %v174
      %v176 = vsub.f32 %v169, %v174
      %v177 = vmul.f32 %v175, 1.442695
      %v178 = vpow.pop %v177
      %v179 = vmul.f32 %v176, 1.442695
      %v180 = vpow.pop %v179
      %v181 = vsel %vm170, %v180, 0.0
      %v182 = vadd.f32 %v178, %v181
      %183 = vadd.xlane.f32.xlu0 %v182
      %v184 = vpop.xlane.xlu0 %183
      %v185 = vlog2.pop %v184
      %v186 = vmul.f32 %v185, 0.6931472
      %v187 = vadd.f32 %v186, %v174
      %188 = vset.pattern.permute.xlu0 0
      %189 = vperm.xlu0 %188, %v159
      %v190 = vpop.permute.xlu0 %189
      %vm191 = vcmp.eq.s32.totalorder %v161, %v190
      %vm192 = vcmp.eq.s32.totalorder %v162, %v190
      %v193 = vsel %vm191, %v168, 0.0
      %v194 = vsel %vm192, %v169, 0.0
      %v195 = vsel %vm170, %v194, 0.0
      %v196 = vadd.f32 %v193, %v195
      %197 = vadd.xlane.f32.xlu0 %v196
      %v198 = vpop.xlane.xlu0 %197
      %v199 = vlaneseq
      %v200 = vshrl.u32 %v199, 7
      %s201 = smul.u32 %s13, 8
      %v202 = vstv %s201
      %v203 = vadd.s32 %v202, %v200
      %vm204 = vcmp.lt.s32.totalorder %v203, 20
      %vm205 = vcmp.ge.s32.totalorder %v159, 0
      %vm206 = vmand %vm205, %vm204
      %v207 = vsub.f32 %v187, %v198
      %v208 = vsel %vm206, %v207, 0.0
      %209 = vxpose.xlu0.b32.start [1/16] %v208, 128
      %210 = vxpose.xlu0.b32.cont [2/16] 0.0, 128
      %211 = vxpose.xlu0.b32.cont [3/16] 0.0, 128
      %212 = vxpose.xlu0.b32.cont [4/16] 0.0, 128
      %213 = vxpose.xlu0.b32.cont [5/16] 0.0, 128
      %214 = vxpose.xlu0.b32.cont [6/16] 0.0, 128
      %215 = vxpose.xlu0.b32.cont [7/16] 0.0, 128
      %216 = vxpose.xlu0.b32.cont [8/16] 0.0, 128
      %217 = vxpose.xlu0.b32.cont [9/16] 0.0, 128
      %218 = vxpose.xlu0.b32.cont [10/16] 0.0, 128
      %219 = vxpose.xlu0.b32.cont [11/16] 0.0, 128
      %220 = vxpose.xlu0.b32.cont [12/16] 0.0, 128
      %221 = vxpose.xlu0.b32.cont [13/16] 0.0, 128
      %222 = vxpose.xlu0.b32.cont [14/16] 0.0, 128
      %223 = vxpose.xlu0.b32.cont [15/16] 0.0, 128
      %224 = vxpose.xlu0.b32.end [16/16] 0.0, 128
      %v225 = vpop.trf.xlu0
      %v226 = vpop.trf.xlu0
      %v227 = vpop.trf.xlu0
      %v228 = vpop.trf.xlu0
      %v229 = vpop.trf.xlu0
      %v230 = vpop.trf.xlu0
      %v231 = vpop.trf.xlu0
      %v232 = vpop.trf.xlu0
      %v233 = vpop.trf.xlu0
      %v234 = vpop.trf.xlu0
      %v235 = vpop.trf.xlu0
      %v236 = vpop.trf.xlu0
      %v237 = vpop.trf.xlu0
      %v238 = vpop.trf.xlu0
      %v239 = vpop.trf.xlu0
      %v240 = vpop.trf.xlu0
      %vm241 = vcmask 57344
      %242 = vst.msk [vmem:[%s156] sm:$0x1] %vm241, %v225
      %p243 = scmp.lt.s32.totalorder %s13, 2
      %s244 = scalar_select %p243, %s13, 2
      %s245 = scalar_lea.vmem %s2, %s244
      // Predicated region
      $region29: #{_nrce_forward.1} parent=27 // pred_check
        %p246 = pneg %p83
      $region30: #{_nrce_forward.1} parent=27 // pred_check_branch
        %248 = sbr.rel (%p246) target = $region32
      $region31: #{_nrce_forward.1} parent=27 // pred_region
        _
      $region32: #{_nrce_forward.1} parent=27 // pred_fallthru
        _
    $region28: #{_nrce_forward.1} parent=5 // pred_fallthru
      _
    %p249 = scmp.le.s32.totalorder 2, %s8
    // Predicated region
    $region33: #{_nrce_forward.1} parent=5 // pred_check
      %p250 = pneg %p249
    $region34: #{_nrce_forward.1} parent=5 // pred_check_branch
      %252 = sbr.rel (%p250) target = $region36
    $region35: #{_nrce_forward.1} parent=5 // pred_region
      %s253 = ssub.s32 %s8, 2
      // Predicated region
      $region37: #{_nrce_forward.1} parent=35 // pred_check
        %p254 = pneg %p89
      $region38: #{_nrce_forward.1} parent=35 // pred_check_branch
        %256 = sbr.rel (%p254) target = $region40
      $region39: #{_nrce_forward.1} parent=35 // pred_region
        %p257 = scmp.lt.s32.totalorder %s14, 2
        %s258 = scalar_select %p257, %s14, 2
        %s259 = scalar_lea.vmem %s2, %s258
      $region40: #{_nrce_forward.1} parent=35 // pred_fallthru
        _
    $region36: #{_nrce_forward.1} parent=5 // pred_fallthru
      _
  $region6: #{_nrce_forward.1} parent=0 // loop_footer
    %s12 = sadd.s32 1, %s8
  $region7: #{_nrce_forward.1} parent=0 // loop_footer_branch
    %7 = sbr.rel target = $region3
  $region8: #{_nrce_forward.1} parent=0 // loop_exit
    _

</llo_original>
